<compile_context>
chip_gen: v6e
topology: v6e:2x2x1
jax: 0.10.0
libtpu: 0.0.40
codegen_flags: <defaults>
</compile_context>

<pallas_src>
import functools
import math

import jax
import jax.numpy as jnp
from jax import lax
from jax.experimental import pallas as pl
from jax.experimental.pallas import tpu as pltpu

LN_EPS = 1e-5  # PyTorch nn.LayerNorm default


def _round_up(x, m):
    return (x + m - 1) // m * m


def _prenorm_linear_kernel(x_ref, gamma_ref, beta_ref, w_ref, b_ref, o_ref,
                           y_ref):
    # x_ref:     (tm, D)   row tile, native dtype (block constant across j)
    # gamma_ref: (1, D)    LayerNorm weight, f32
    # beta_ref:  (1, D)    LayerNorm bias,   f32
    # w_ref:     (D, tn)   Linear weight tile, native dtype
    # b_ref:     (1, tn)   Linear bias tile,   f32
    # o_ref:     (tm, tn)
    # y_ref:     (tm, D)   VMEM scratch: cached normalized activations.
    #
    # LayerNorm is computed only on the first D_out tile (j == 0) and cached
    # in y_ref for the remaining j steps.  j is the innermost "arbitrary"
    # grid axis, so the cache is always (re)filled before it is reused and
    # the x block does not change until j wraps back to 0.
    @pl.when(pl.program_id(1) == 0)
    def _():
        x = x_ref[...].astype(jnp.float32)
        inv_d = 1.0 / x.shape[-1]
        # Single-pass statistics: E[x] and E[x^2] in one sweep over the tile.
        mean = jnp.sum(x, axis=-1, keepdims=True) * inv_d
        ex2 = jnp.sum(x * x, axis=-1, keepdims=True) * inv_d
        var = jnp.maximum(ex2 - mean * mean, 0.0)
        x_hat = (x - mean) * lax.rsqrt(var + LN_EPS)
        y = x_hat * gamma_ref[...] + beta_ref[...]
        # NOTE: if rows % tm != 0, the tail block's padding rows hold
        # undefined data; LN and the matmul are row-independent and those
        # output rows are masked on store, so valid rows are unaffected.
        y_ref[...] = y.astype(y_ref.dtype)

    # Matmul in the native parameter dtype (bf16 stays bf16 on the MXU),
    # f32 accumulation.
    acc = jnp.dot(y_ref[...], w_ref[...], preferred_element_type=jnp.float32)
    o_ref[...] = (acc + b_ref[...]).astype(o_ref.dtype)


def _vmem_need(tm, tn, D, xi, wi):
    """VMEM bytes for one grid step, incl. double buffers and f32 temporaries."""
    return (2 * tm * D * xi          # x tile (double buffered)
            + 2 * D * tn * wi        # W column tile (double buffered)
            + 2 * tm * tn * xi       # out tile (double buffered)
            + tm * D * wi            # normalized-activation scratch
            + 3 * tm * D * 4         # f32 LN temporaries (x, x_hat, y)
            + tm * tn * 4            # f32 matmul accumulator
            + 2 * (2 * D + tn) * 4)  # gamma / beta / bias (double buffered)


def _vmem_capacity_bytes():
    try:
        return int(pltpu.get_tpu_info().vmem_capacity_bytes)
    except Exception:
        return 64 << 20  # conservative (v7x-sized) fallback


def prepare_prenorm_linear_params(gamma, beta, w, b):
    """One-time parameter prep (call at init, NOT per forward).

    Transposes W from PyTorch's (D_out, D) to (D, D_out), pads D_out to a
    multiple of 128 (lane-dense, unmasked output stores) and hoists the f32
    casts of gamma/beta/bias out of the per-call path.
    """
    D_out, D = w.shape
    D_out_p = _round_up(D_out, 128)
    w_t = w.T  # (D, D_out), native dtype
    b_p = b
    if D_out_p != D_out:
        w_t = jnp.pad(w_t, ((0, 0), (0, D_out_p - D_out)))
        b_p = jnp.pad(b, (0, D_out_p - D_out))
    gamma2 = gamma.reshape(1, D).astype(jnp.float32)
    beta2 = beta.reshape(1, D).astype(jnp.float32)
    b2 = b_p.reshape(1, D_out_p).astype(jnp.float32)
    return gamma2, beta2, w_t, b2


@functools.partial(jax.jit,
                   static_argnames=("d_out", "block_rows", "block_cols"))
def prenorm_linear_prepared(x, gamma2, beta2, w_t, b2, *, d_out,
                            block_rows=None, block_cols=512):
    """PreNorm(dim, Linear(dim, d_out)).forward(x) with prepared params.

    x: (..., D); gamma2/beta2: (1, D) f32; w_t: (D, D_out_padded);
    b2: (1, D_out_padded) f32.  Returns (..., d_out).
    """
    lead = x.shape[:-1]
    D = x.shape[-1]
    D_out_p = w_t.shape[1]
    rows = math.prod(lead) if lead else 1
    x2 = x.reshape(rows, D)

    xi = x2.dtype.itemsize
    wi = w_t.dtype.itemsize
    row_align = 16 if xi == 2 else 8

    if block_rows is None:
        # Flops-per-W-byte = 2*tm/wi must clear the compute:HBM roofline
        # (~650 flop/B on v6e, ~310 flop/B per TC on v7x, ~240 on v5e).
        block_rows = 1024 if xi == 2 else 512

    capacity = _vmem_capacity_bytes()
    budget = (capacity * 4) // 5  # ~100 MiB on v5e/v6e, ~51 MiB on v7x

    # Output-column tile candidates: prefer block_cols, shrink to 256 (full
    # v6e/v7x MXU width) before shrinking tm; 128 only as a last resort.
    tn0 = min(_round_up(block_cols, 128), D_out_p)
    tn_cands = []
    for t in (tn0, min(256, D_out_p)):
        if t not in tn_cands:
            tn_cands.append(t)

    # Row-tile candidates, large -> small (keep tm as large as possible).
    if rows <= block_rows:
        tm_cands = [rows]
    else:
        tm_cands = []
        t = _round_up(min(block_rows, rows), row_align)
        while t >= row_align:
            tm_cands.append(t)
            t = (t // 2 // row_align) * row_align

    tm, tn = tm_cands[-1], min(128, D_out_p)
    found = False
    for cand_tm in tm_cands:
        for cand_tn in tn_cands:
            if _vmem_need(cand_tm, cand_tn, D, xi, wi) <= budget:
                tm, tn, found = cand_tm, cand_tn, True
                break
        if found:
            break

    need = _vmem_need(tm, tn, D, xi, wi)
    vmem_limit = int(min(max(need + need // 4 + (2 << 20), 32 << 20), budget))

    num_i = pl.cdiv(rows, tm)
    grid = (num_i, pl.cdiv(D_out_p, tn))

    cost = pl.CostEstimate(
        flops=2 * rows * D * D_out_p + 8 * rows * D,
        transcendentals=rows,  # one rsqrt per row (LN computed once per row)
        bytes_accessed=(rows * D * xi               # x read once per row tile
                        + num_i * D * D_out_p * wi  # W re-streamed per row tile
                        + rows * D_out_p * xi       # output
                        + (2 * D + D_out_p) * 4),   # params
    )

    # TODO(synk): if a profile shows exposed W DMA (HBM-bound regime), raise
    # the W BlockSpec to pipeline_mode=pl.Buffered(3).
    out2 = pl.pallas_call(
        _prenorm_linear_kernel,
        out_shape=jax.ShapeDtypeStruct((rows, D_out_p), x.dtype),
        grid_spec=pltpu.PrefetchScalarGridSpec(
            num_scalar_prefetch=0,
            grid=grid,
            in_specs=[
                pl.BlockSpec((tm, D), lambda i, j: (i, 0)),   # x rows (const over j)
                pl.BlockSpec((1, D), lambda i, j: (0, 0)),    # gamma (f32)
                pl.BlockSpec((1, D), lambda i, j: (0, 0)),    # beta (f32)
                pl.BlockSpec((D, tn), lambda i, j: (0, j)),   # W column tile
                pl.BlockSpec((1, tn), lambda i, j: (0, j)),   # bias tile (f32)
            ],
            out_specs=pl.BlockSpec((tm, tn), lambda i, j: (i, j)),
            scratch_shapes=[pltpu.VMEM((tm, D), w_t.dtype)],  # LN cache
        ),
        compiler_params=pltpu.CompilerParams(
            # j carries the LN-cache dependency -> "arbitrary"; the row axis
            # stays "parallel" so v7x's two TensorCores shard the rows.
            dimension_semantics=("parallel", "arbitrary"),
            vmem_limit_bytes=vmem_limit,
        ),
        cost_estimate=cost,
    )(x2, gamma2, beta2, w_t, b2)

    if D_out_p != d_out:
        out2 = out2[:, :d_out]
    return out2.reshape(*lead, d_out)


def prenorm_linear(x, gamma, beta, w, b, **kw):
    """Convenience one-shot wrapper.  For repeated calls, run
    prepare_prenorm_linear_params once and call prenorm_linear_prepared."""
    gamma2, beta2, w_t, b2 = prepare_prenorm_linear_params(gamma, beta, w, b)
    return prenorm_linear_prepared(x, gamma2, beta2, w_t, b2,
                                   d_out=w.shape[0], **kw)


def _reference(x, gamma, beta, w, b):
    xf = x.astype(jnp.float32)
    mean = jnp.mean(xf, axis=-1, keepdims=True)
    var = jnp.mean((xf - mean) ** 2, axis=-1, keepdims=True)
    y = (xf - mean) / jnp.sqrt(var + LN_EPS) * gamma + beta
    return (y @ w.T.astype(jnp.float32) + b).astype(x.dtype)


if __name__ == "__main__":
    key = jax.random.PRNGKey(0)
    B, S, D, D_out = 2, 8, 128, 128   # small, lane-aligned shapes

    kx, kg, kb, kw, kbias = jax.random.split(key, 5)
    x = jax.random.normal(kx, (B, S, D), dtype=jnp.float32)
    # LayerNorm default gamma=1, beta=0; perturbed so the test is non-trivial.
    gamma = 1.0 + 0.1 * jax.random.normal(kg, (D,), dtype=jnp.float32)
    beta = 0.1 * jax.random.normal(kb, (D,), dtype=jnp.float32)
    w = 0.1 * jax.random.normal(kw, (D_out, D), dtype=jnp.float32)
    b = 0.1 * jax.random.normal(kbias, (D_out,), dtype=jnp.float32)

    # Parameter prep done ONCE (outside the per-call path, per review).
    gamma2, beta2, w_t, b2 = prepare_prenorm_linear_params(gamma, beta, w, b)

    out = prenorm_linear_prepared(x, gamma2, beta2, w_t, b2, d_out=D_out)
    out = jax.block_until_ready(out)

    ref = _reference(x, gamma, beta, w, b)
    assert out.shape == (B, S, D_out), out.shape
    assert jnp.allclose(out, ref, atol=1e-4, rtol=1e-4), float(
        jnp.max(jnp.abs(out - ref)))

    print("KERNEL_OK")
</pallas_src>

<mosaic_0001>
module attributes {stable_mosaic.version = 11 : i64} {
  func.func @_prenorm_linear_kernel(%arg0: i32, %arg1: i32, %arg2: memref<16x128xf32, #tpu.memory_space<vmem>>, %arg3: memref<1x128xf32, #tpu.memory_space<vmem>>, %arg4: memref<1x128xf32, #tpu.memory_space<vmem>>, %arg5: memref<128x128xf32, #tpu.memory_space<vmem>>, %arg6: memref<1x128xf32, #tpu.memory_space<vmem>>, %arg7: memref<16x128xf32, #tpu.memory_space<vmem>>, %arg8: memref<16x128xf32, #tpu.memory_space<vmem>>) attributes {dimension_semantics = [#tpu.dimension_semantics<parallel>, #tpu.dimension_semantics<arbitrary>], iteration_bounds = array<i64: 1, 1>, scalar_prefetch = 0 : i64, scratch_operands = 1 : i64, tpu.core_type = #tpu.core_type<tc>, window_params = [{transform_indices = @transform_0, window_bounds = array<i64: 16, 128>}, {pipeline_mode = #tpu.pipeline_mode<synchronous>, transform_indices = @transform_1, window_bounds = array<i64: 1, 128>}, {pipeline_mode = #tpu.pipeline_mode<synchronous>, transform_indices = @transform_2, window_bounds = array<i64: 1, 128>}, {transform_indices = @transform_3, window_bounds = array<i64: 128, 128>}, {transform_indices = @transform_4, window_bounds = array<i64: 1, 128>}, {transform_indices = @transform_5, window_bounds = array<i64: 16, 128>}]} {
    %c0_i32 = arith.constant 0 : i32
    %0 = arith.cmpi eq, %arg1, %c0_i32 : i32
    %1 = arith.extui %0 : i1 to i32
    %c0_i32_0 = arith.constant 0 : i32
    %2 = arith.cmpi ne, %1, %c0_i32_0 : i32
    scf.if %2 {
      %c0_8 = arith.constant 0 : index
      %c0_9 = arith.constant 0 : index
      %10 = vector.load %arg2[%c0_8, %c0_9] : memref<16x128xf32, #tpu.memory_space<vmem>>, vector<16x128xf32>
      %cst_10 = arith.constant dense<0.000000e+00> : vector<16xf32>
      %11 = vector.multi_reduction <add>, %10, %cst_10 [1] : vector<16x128xf32> to vector<16xf32>
      %12 = vector.shape_cast %11 : vector<16xf32> to vector<16x1xf32>
      %cst_11 = arith.constant 7.812500e-03 : f32
      %13 = vector.broadcast %cst_11 : f32 to vector<16x1xf32>
      %14 = arith.mulf %12, %13 : vector<16x1xf32>
      %15 = arith.mulf %10, %10 : vector<16x128xf32>
      %cst_12 = arith.constant dense<0.000000e+00> : vector<16xf32>
      %16 = vector.multi_reduction <add>, %15, %cst_12 [1] : vector<16x128xf32> to vector<16xf32>
      %17 = vector.shape_cast %16 : vector<16xf32> to vector<16x1xf32>
      %cst_13 = arith.constant 7.812500e-03 : f32
      %18 = vector.broadcast %cst_13 : f32 to vector<16x1xf32>
      %19 = arith.mulf %17, %18 : vector<16x1xf32>
      %20 = arith.mulf %14, %14 : vector<16x1xf32>
      %21 = arith.subf %19, %20 : vector<16x1xf32>
      %cst_14 = arith.constant 0.000000e+00 : f32
      %22 = vector.broadcast %cst_14 : f32 to vector<16x1xf32>
      %23 = arith.maximumf %21, %22 : vector<16x1xf32>
      %24 = vector.broadcast %14 : vector<16x1xf32> to vector<16x128xf32>
      %25 = arith.subf %10, %24 : vector<16x128xf32>
      %cst_15 = arith.constant 9.99999974E-6 : f32
      %26 = vector.broadcast %cst_15 : f32 to vector<16x1xf32>
      %27 = arith.addf %23, %26 : vector<16x1xf32>
      %28 = math.rsqrt %27 : vector<16x1xf32>
      %29 = vector.broadcast %28 : vector<16x1xf32> to vector<16x128xf32>
      %30 = arith.mulf %25, %29 : vector<16x128xf32>
      %c0_16 = arith.constant 0 : index
      %c0_17 = arith.constant 0 : index
      %31 = vector.load %arg3[%c0_16, %c0_17] : memref<1x128xf32, #tpu.memory_space<vmem>>, vector<1x128xf32>
      %32 = vector.broadcast %31 : vector<1x128xf32> to vector<16x128xf32>
      %33 = arith.mulf %30, %32 : vector<16x128xf32>
      %c0_18 = arith.constant 0 : index
      %c0_19 = arith.constant 0 : index
      %34 = vector.load %arg4[%c0_18, %c0_19] : memref<1x128xf32, #tpu.memory_space<vmem>>, vector<1x128xf32>
      %35 = vector.broadcast %34 : vector<1x128xf32> to vector<16x128xf32>
      %36 = arith.addf %33, %35 : vector<16x128xf32>
      %c0_20 = arith.constant 0 : index
      %c0_21 = arith.constant 0 : index
      %37 = vector.load %arg8[%c0_20, %c0_21] : memref<16x128xf32, #tpu.memory_space<vmem>>, vector<16x128xf32>
      tpu.vector_store %arg8[%c0_20, %c0_21], %36 {strides = array<i32>} : memref<16x128xf32, #tpu.memory_space<vmem>>, vector<16x128xf32>,
    } else {
    }
    %c0 = arith.constant 0 : index
    %c0_1 = arith.constant 0 : index
    %3 = vector.load %arg8[%c0, %c0_1] : memref<16x128xf32, #tpu.memory_space<vmem>>, vector<16x128xf32>
    %c0_2 = arith.constant 0 : index
    %c0_3 = arith.constant 0 : index
    %4 = vector.load %arg5[%c0_2, %c0_3] : memref<128x128xf32, #tpu.memory_space<vmem>>, vector<128x128xf32>
    %cst = arith.constant dense<0.000000e+00> : vector<16x128xf32>
    %5 = tpu.matmul %3, %4, %cst {dimension_numbers = #tpu.dot_dimension_numbers<[1], [0], [0], [1], [0, 0, 1, 1], [], []>} : vector<16x128xf32>, vector<128x128xf32>, vector<16x128xf32> -> vector<16x128xf32>
    %c0_4 = arith.constant 0 : index
    %c0_5 = arith.constant 0 : index
    %6 = vector.load %arg6[%c0_4, %c0_5] : memref<1x128xf32, #tpu.memory_space<vmem>>, vector<1x128xf32>
    %7 = vector.broadcast %6 : vector<1x128xf32> to vector<16x128xf32>
    %8 = arith.addf %5, %7 : vector<16x128xf32>
    %c0_6 = arith.constant 0 : index
    %c0_7 = arith.constant 0 : index
    %9 = vector.load %arg7[%c0_6, %c0_7] : memref<16x128xf32, #tpu.memory_space<vmem>>, vector<16x128xf32>
    tpu.vector_store %arg7[%c0_6, %c0_7], %8 {strides = array<i32>} : memref<16x128xf32, #tpu.memory_space<vmem>>, vector<16x128xf32>,
    return
  }
  func.func @transform_0(%arg0: i32, %arg1: i32) -> (i32, i32) {
    %c0_i32 = arith.constant 0 : i32
    %c0_i32_0 = arith.constant 0 : i32
    return %arg0, %c0_i32 : i32, i32
  }
  func.func @transform_1(%arg0: i32, %arg1: i32) -> (i32, i32) {
    %c0_i32 = arith.constant 0 : i32
    %c0_i32_0 = arith.constant 0 : i32
    %c0_i32_1 = arith.constant 0 : i32
    return %c0_i32, %c0_i32_0 : i32, i32
  }
  func.func @transform_2(%arg0: i32, %arg1: i32) -> (i32, i32) {
    %c0_i32 = arith.constant 0 : i32
    %c0_i32_0 = arith.constant 0 : i32
    %c0_i32_1 = arith.constant 0 : i32
    return %c0_i32, %c0_i32_0 : i32, i32
  }
  func.func @transform_3(%arg0: i32, %arg1: i32) -> (i32, i32) {
    %c0_i32 = arith.constant 0 : i32
    %c0_i32_0 = arith.constant 0 : i32
    return %c0_i32, %arg1 : i32, i32
  }
  func.func @transform_4(%arg0: i32, %arg1: i32) -> (i32, i32) {
    %c0_i32 = arith.constant 0 : i32
    %c0_i32_0 = arith.constant 0 : i32
    return %c0_i32, %arg1 : i32, i32
  }
  func.func @transform_5(%arg0: i32, %arg1: i32) -> (i32, i32) {
    %c0_i32 = arith.constant 0 : i32
    return %arg0, %arg1 : i32, i32
  }
}

</mosaic_0001>

<llo_original>
// kernel: prenorm_linear_prepared.1
$region0: #{prenorm_linear_prepared.1}
  #allocation0 [shape = 'u32[]', space=smem, size = 0x4, offset = 0x4, fixed_abs, tag = 'smem constant byte address 0x4 - core index']
  #allocation1 [shape = 'u32[144,128]{1,0:T(1,128)}', space=vmem, size = 0x12000, scoped, tag = 'internal scratch']
  #allocation2 [shape = 'f32[16,128]{1,0:T(8,128)}', space=vmem, size = 0x2000, scoped, tag = 'scratch operand']
  %s0 = inlined_call_operand.hbm [shape: f32[16,128], index: 0, kind: input, shape index: {}]
  %s1 = inlined_call_operand.vmem [shape: f32[1,128], index: 1, kind: input, shape index: {}]
  %s2 = inlined_call_operand.vmem [shape: f32[1,128], index: 2, kind: input, shape index: {}]
  %s3 = inlined_call_operand.hbm [shape: f32[128,128], index: 3, kind: input, shape index: {}]
  %s4 = inlined_call_operand.vmem [shape: f32[1,128], index: 4, kind: input, shape index: {}]
  %s5 = inlined_call_operand.hbm [shape: f32[16,128], index: 5, kind: output, shape index: {}]
  %s6 = sld [smem:[#allocation0]]
  $region42: #{prenorm_linear_prepared.1} parent=0
    _
  %s8 = ssub.s32 1, %s6
  %s9 = scalar_select 0, %s8, %s6
  $region1: #{prenorm_linear_prepared.1} parent=0
    #allocation3 [shape = 'u8[8192]{0}', space=vmem, size = 0x2000, scoped, tag = 'input window, operand 0, single buffered']
    #allocation4 [shape = 's32[1]{0}', space=sflag, size = 0x4, scoped, tag = 'scoped memory for prenorm_linear_prepared.1']
    #allocation5 [shape = 's32[1]{0}', space=sflag, size = 0x4, scoped, tag = 'scoped memory for prenorm_linear_prepared.1']
    #allocation6 [shape = 'u8[65536]{0}', space=vmem, size = 0x10000, scoped, tag = 'input window, operand 3, single buffered']
    #allocation7 [shape = 's32[1]{0}', space=sflag, size = 0x4, scoped, tag = 'scoped memory for prenorm_linear_prepared.1']
    #allocation8 [shape = 'u8[8192]{0}', space=vmem, size = 0x2000, scoped, tag = 'output window, operand 0, single buffered']
    %10 = vsyncpa [#allocation4], 0
    %11 = vsyncpa [#allocation7], 0
    %12 = vsyncpa [#allocation5], 0
    // Predicated region
    $region2: #{prenorm_linear_prepared.1} parent=1 // pred_check
      _
    $region3: #{prenorm_linear_prepared.1} parent=1 // pred_check_branch
      %14 = sbr.rel (0) target = $region5
    $region4: #{prenorm_linear_prepared.1} parent=1 // pred_region
      %s16 = ssub.s32 256, 256
      %17 = vsyncadd [#allocation4], %s16
      %s18 = sshll.u32 [#allocation3], 4
      %s19 = int_to_ptr.vmem [resolvable:$true] %s18
      %24 = dma.hbm_to_vmem [thread:$0]  %s0, 256, %s19, [#allocation4], 128, 128, 8
    $region5: #{prenorm_linear_prepared.1} parent=1 // pred_fallthru
      _
    // Predicated region
    $region6: #{prenorm_linear_prepared.1} parent=1 // pred_check
      _
    $region7: #{prenorm_linear_prepared.1} parent=1 // pred_check_branch
      %26 = sbr.rel (0) target = $region9
    $region8: #{prenorm_linear_prepared.1} parent=1 // pred_region
      _
    $region9: #{prenorm_linear_prepared.1} parent=1 // pred_fallthru
      _
    // Predicated region
    $region10: #{prenorm_linear_prepared.1} parent=1 // pred_check
      _
    $region11: #{prenorm_linear_prepared.1} parent=1 // pred_check_branch
      %28 = sbr.rel (0) target = $region13
    $region12: #{prenorm_linear_prepared.1} parent=1 // pred_region
      _
    $region13: #{prenorm_linear_prepared.1} parent=1 // pred_fallthru
      _
    // Predicated region
    $region14: #{prenorm_linear_prepared.1} parent=1 // pred_check
      _
    $region15: #{prenorm_linear_prepared.1} parent=1 // pred_check_branch
      %30 = sbr.rel (0) target = $region17
    $region16: #{prenorm_linear_prepared.1} parent=1 // pred_region
      %s32 = ssub.s32 2048, 2048
      %33 = vsyncadd [#allocation7], %s32
      %s34 = sshll.u32 [#allocation6], 4
      %s35 = int_to_ptr.vmem [resolvable:$true] %s34
      %40 = dma.hbm_to_vmem [thread:$0]  %s3, 2048, %s35, [#allocation7], 128, 128, 8
    $region17: #{prenorm_linear_prepared.1} parent=1 // pred_fallthru
      _
    // Predicated region
    $region18: #{prenorm_linear_prepared.1} parent=1 // pred_check
      _
    $region19: #{prenorm_linear_prepared.1} parent=1 // pred_check_branch
      %42 = sbr.rel (0) target = $region21
    $region20: #{prenorm_linear_prepared.1} parent=1 // pred_region
      _
    $region21: #{prenorm_linear_prepared.1} parent=1 // pred_fallthru
      _
    // Predicated region
    $region22: #{prenorm_linear_prepared.1} parent=1 // pred_check
      _
    $region23: #{prenorm_linear_prepared.1} parent=1 // pred_check_branch
      %44 = sbr.rel (0) target = $region25
    $region24: #{prenorm_linear_prepared.1} parent=1 // pred_region
      %45 = dma.done [#allocation4], 256
    $region25: #{prenorm_linear_prepared.1} parent=1 // pred_fallthru
      _
    // Predicated region
    $region26: #{prenorm_linear_prepared.1} parent=1 // pred_check
      _
    $region27: #{prenorm_linear_prepared.1} parent=1 // pred_check_branch
      %47 = sbr.rel (0) target = $region29
    $region28: #{prenorm_linear_prepared.1} parent=1 // pred_region
      %48 = dma.done [#allocation7], 2048
    $region29: #{prenorm_linear_prepared.1} parent=1 // pred_fallthru
      _
    %p49 = scmp.eq.s32.totalorder 0, 0
    // Predicated region
    $region30: #{prenorm_linear_prepared.1} parent=1 // pred_check
      %p50 = pneg %p49
    $region31: #{prenorm_linear_prepared.1} parent=1 // pred_check_branch
      %52 = sbr.rel (%p50) target = $region33
    $region32: #{prenorm_linear_prepared.1} parent=1 // pred_region
      %v53 = vld [vmem:[#allocation3] sm:$0xff]
      %v54 = vld [vmem:[#allocation3 + $0x8] sm:$0xff]
      %55 = vadd.xlane.f32.xlu0 %v53
      %v56 = vpop.xlane.xlu0 %55
      %57 = vadd.xlane.f32.xlu0 %v54
      %v58 = vpop.xlane.xlu0 %57
      %v59 = vmul.f32 %v56, 0.0078125
      %v60 = vmul.f32 %v58, 0.0078125
      %v61 = vmul.f32 %v53, %v53
      %v62 = vmul.f32 %v54, %v54
      %63 = vadd.xlane.f32.xlu0 %v61
      %v64 = vpop.xlane.xlu0 %63
      %65 = vadd.xlane.f32.xlu0 %v62
      %v66 = vpop.xlane.xlu0 %65
      %v67 = vmul.f32 %v64, 0.0078125
      %v68 = vmul.f32 %v66, 0.0078125
      %v69 = vmul.f32 %v59, %v59
      %v70 = vmul.f32 %v60, %v60
      %v71 = vsub.f32 %v67, %v69
      %v72 = vsub.f32 %v68, %v70
      %v73 = vmax.f32 %v71, 0.0
      %v74 = vmax.f32 %v72, 0.0
      %v75 = vsub.f32 %v53, %v59
      %v76 = vsub.f32 %v54, %v60
      %v77 = vadd.f32 %v73, 1e-05
      %v78 = vadd.f32 %v74, 1e-05
      %v79 = vrsqrt.pop %v77
      %v80 = vrsqrt.pop %v78
      %v81 = vmul.f32 %v75, %v79
      %v82 = vmul.f32 %v76, %v80
      %v83 = vld [vmem:[%s1] sm:$0x1]
      %v85 = vlaneseq
      %v86 = vshrl.u32 %v85, 7
      %v87 = vsub.s32 0, %v86
      %v88 = vrot.slane %v83, %v87
      %v90 = vmul.f32 %v81, %v88
      %v91 = vmul.f32 %v82, %v88
      %v92 = vld [vmem:[%s2] sm:$0x1]
      %v94 = vlaneseq
      %v95 = vshrl.u32 %v94, 7
      %v96 = vsub.s32 0, %v95
      %v97 = vrot.slane %v92, %v96
      %v99 = vadd.f32 %v90, %v97
      %v100 = vadd.f32 %v91, %v97
      %101 = vst [vmem:[#allocation2] sm:$0xff] %v99
      %102 = vst [vmem:[#allocation2 + $0x8] sm:$0xff] %v100
    $region33: #{prenorm_linear_prepared.1} parent=1 // pred_fallthru
      _
    %v103 = vld [vmem:[#allocation2] sm:$0xff]
    %v104 = vld [vmem:[#allocation2 + $0x8] sm:$0xff]
    %v105 = vld [vmem:[#allocation6] sm:$0xff]
    %v106 = vld [vmem:[#allocation6 + $0x8] sm:$0xff]
    %v107 = vld [vmem:[#allocation6 + $0x10] sm:$0xff]
    %v108 = vld [vmem:[#allocation6 + $0x18] sm:$0xff]
    %v109 = vld [vmem:[#allocation6 + $0x20] sm:$0xff]
    %v110 = vld [vmem:[#allocation6 + $0x28] sm:$0xff]
    %v111 = vld [vmem:[#allocation6 + $0x30] sm:$0xff]
    %v112 = vld [vmem:[#allocation6 + $0x38] sm:$0xff]
    %v113 = vld [vmem:[#allocation6 + $0x40] sm:$0xff]
    %v114 = vld [vmem:[#allocation6 + $0x48] sm:$0xff]
    %v115 = vld [vmem:[#allocation6 + $0x50] sm:$0xff]
    %v116 = vld [vmem:[#allocation6 + $0x58] sm:$0xff]
    %v117 = vld [vmem:[#allocation6 + $0x60] sm:$0xff]
    %v118 = vld [vmem:[#allocation6 + $0x68] sm:$0xff]
    %v119 = vld [vmem:[#allocation6 + $0x70] sm:$0xff]
    %v120 = vld [vmem:[#allocation6 + $0x78] sm:$0xff]
    %v121 = vld [vmem:[%s4] sm:$0x1]
    %v123 = vlaneseq
    %v124 = vshrl.u32 %v123, 7
    %v125 = vsub.s32 0, %v124
    %v126 = vrot.slane %v121, %v125
    %128 = vmatprep.subr.mxu0 0.0
    %129 = vmatpush1.msra.mxu0 %v120
    %130 = vmatprep.subr.mxu0 0.0
    %131 = vmatpush1.msra.mxu0 %v119
    %132 = vmatprep.subr.mxu0 0.0
    %133 = vmatpush1.msra.mxu0 %v118
    %134 = vmatprep.subr.mxu0 0.0
    %135 = vmatpush1.msra.mxu0 %v117
    %136 = vmatprep.subr.mxu0 0.0
    %137 = vmatpush1.msra.mxu0 %v116
    %138 = vmatprep.subr.mxu0 0.0
    %139 = vmatpush1.msra.mxu0 %v115
    %140 = vmatprep.subr.mxu0 0.0
    %141 = vmatpush1.msra.mxu0 %v114
    %142 = vmatprep.subr.mxu0 0.0
    %143 = vmatpush1.msra.mxu0 %v113
    %144 = vmatprep.subr.mxu0 0.0
    %145 = vmatpush1.msra.mxu0 %v112
    %146 = vmatprep.subr.mxu0 0.0
    %147 = vmatpush1.msra.mxu0 %v111
    %148 = vmatprep.subr.mxu0 0.0
    %149 = vmatpush1.msra.mxu0 %v110
    %150 = vmatprep.subr.mxu0 0.0
    %151 = vmatpush1.msra.mxu0 %v109
    %152 = vmatprep.subr.mxu0 0.0
    %153 = vmatpush1.msra.mxu0 %v108
    %154 = vmatprep.subr.mxu0 0.0
    %155 = vmatpush1.msra.mxu0 %v107
    %156 = vmatprep.subr.mxu0 0.0
    %157 = vmatpush1.msra.mxu0 %v106
    %158 = vmatprep.subr.mxu0 0.0
    %159 = vmatpush1.msra.mxu0 %v105
    %160 = vmatprep.subr.mxu0 0.0
    %161 = vmatpush2.msra.mxu0 0.0
    %162 = vmatprep.subr.mxu0 0.0
    %163 = vmatpush2.msra.mxu0 0.0
    %164 = vmatprep.subr.mxu0 0.0
    %165 = vmatpush2.msra.mxu0 0.0
    %166 = vmatprep.subr.mxu0 0.0
    %167 = vmatpush2.msra.mxu0 0.0
    %168 = vmatprep.subr.mxu0 0.0
    %169 = vmatpush2.msra.mxu0 0.0
    %170 = vmatprep.subr.mxu0 0.0
    %171 = vmatpush2.msra.mxu0 0.0
    %172 = vmatprep.subr.mxu0 0.0
    %173 = vmatpush2.msra.mxu0 0.0
    %174 = vmatprep.subr.mxu0 0.0
    %175 = vmatpush2.msra.mxu0 0.0
    %176 = vmatprep.subr.mxu0 0.0
    %177 = vmatpush2.msra.mxu0 0.0
    %178 = vmatprep.subr.mxu0 0.0
    %179 = vmatpush2.msra.mxu0 0.0
    %180 = vmatprep.subr.mxu0 0.0
    %181 = vmatpush2.msra.mxu0 0.0
    %182 = vmatprep.subr.mxu0 0.0
    %183 = vmatpush2.msra.mxu0 0.0
    %184 = vmatprep.subr.mxu0 0.0
    %185 = vmatpush2.msra.mxu0 0.0
    %186 = vmatprep.subr.mxu0 0.0
    %187 = vmatpush2.msra.mxu0 0.0
    %188 = vmatprep.subr.mxu0 0.0
    %189 = vmatpush2.msra.mxu0 0.0
    %190 = vmatprep.subr.mxu0 0.0
    %191 = vmatpush2.msra.mxu0 0.0
    %192 = vmatprep.mubr.f32.mxu0 0.0
    %193 = vmatmul.mubr.f32.gmra.mxu0 %v103
    %v194 = vpop.f32.mrf.mxu0
    %v195 = vadd.f32 %v126, %v194
    %v196 = vpop.f32.mrf.mxu0
    %197 = vmatprep.mubr.f32.mxu0 0.0
    %198 = vmatmul.mubr.f32.gmra.mxu0 %v104
    %v199 = vpop.f32.mrf.mxu0
    %v200 = vadd.f32 %v126, %v199
    %v201 = vpop.f32.mrf.mxu0
    %202 = vdwg.mxu0
    %203 = vst [vmem:[#allocation8] sm:$0xff] %v195
    %204 = vst [vmem:[#allocation8 + $0x8] sm:$0xff] %v200
    // Predicated region
    $region34: #{prenorm_linear_prepared.1} parent=1 // pred_check
      _
    $region35: #{prenorm_linear_prepared.1} parent=1 // pred_check_branch
      %206 = sbr.rel (0) target = $region37
    $region36: #{prenorm_linear_prepared.1} parent=1 // pred_region
      %s208 = ssub.s32 256, 256
      %209 = vsyncadd [#allocation5], %s208
      %s210 = sshll.u32 [#allocation8], 4
      %s211 = int_to_ptr.vmem [resolvable:$true] %s210
      %216 = dma.vmem_to_hbm [thread:$0]  %s211, 256, %s5, [#allocation5], 128, 128, 8
    $region37: #{prenorm_linear_prepared.1} parent=1 // pred_fallthru
      _
    // Predicated region
    $region38: #{prenorm_linear_prepared.1} parent=1 // pred_check
      _
    $region39: #{prenorm_linear_prepared.1} parent=1 // pred_check_branch
      %218 = sbr.rel (0) target = $region41
    $region40: #{prenorm_linear_prepared.1} parent=1 // pred_region
      %219 = dma.done [#allocation5], 256
    $region41: #{prenorm_linear_prepared.1} parent=1 // pred_fallthru
      _
    %220 = vsyncpa [#allocation4], 1
    %221 = vsyncpa [#allocation7], 1
    %222 = vsyncpa [#allocation5], 1

</llo_original>
